<compile_context>
chip_gen: v5e
topology: v5e:2x2
jax: 0.10.0
libtpu: 0.0.40
codegen_flags: <defaults>
</compile_context>

<pallas_src>
import functools

import jax
import jax.numpy as jnp
from jax import lax
from jax.experimental import pallas as pl
from jax.experimental.pallas import tpu as pltpu

EPS = 1e-6  # layer_norm_eps


def _fused_uvit_kernel(x_ref, wd_ref, bd_ref, wu_ref, bu_ref, o_ref, *, eps, c):
    # --- RMSNorm over the C channels of each of the 4 window positions ------
    # Per-slice normalize + bf16 cast (gamma folded into wd rows); avoids any
    # f32 (TM,4C) scale temporary and broadcast_to/concat of f32.
    parts = []
    for p in range(4):
        xp = x_ref[:, p * c:(p + 1) * c].astype(jnp.float32)          # (TM, C)
        inv = lax.rsqrt(jnp.mean(xp * xp, axis=-1, keepdims=True) + eps)
        parts.append((xp * inv).astype(jnp.bfloat16))
    xn = jnp.concatenate(parts, axis=-1)                              # (TM, 4C) bf16

    # --- Downsample Conv2d(k=2,s=2): ONE fused (TM,4C)@(4C,C) MXU matmul ----
    y = jnp.dot(xn, wd_ref[...], preferred_element_type=jnp.float32) + bd_ref[...]

    # --- RMSNorm over channels (gamma folded into wu rows) ------------------
    inv2 = lax.rsqrt(jnp.mean(y * y, axis=-1, keepdims=True) + eps)
    yn = (y * inv2).astype(jnp.bfloat16)

    # --- Upsample ConvTranspose2d(k=2,s=2): ONE fused (TM,C)@(C,4C) matmul --
    o = jnp.dot(yn, wu_ref[...], preferred_element_type=jnp.float32) + bu_ref[...]
    o_ref[...] = o.astype(o_ref.dtype)                                # bf16 store


def _pick_tile_and_vmem(M, C):
    """Generation-aware row-tile size and scoped VMEM limit."""
    C4 = 4 * C
    try:
        vmem_cap = int(pltpu.get_tpu_info().vmem_capacity_bytes)
    except Exception:
        vmem_cap = 64 << 20                      # conservative (v7x per-TC VMEM)
    # Scoped limit with headroom for compiler scratch / spills:
    #   v7x (64 MiB)  -> 48 MiB;  v5e/v6e (128 MiB) -> 100 MiB.
    vmem_limit = max(32 << 20, min(vmem_cap - (16 << 20), 100 << 20))

    weight_bytes = 2 * (C4 * C * 2) + (C4 + C) * 4            # bf16 weights + biases
    # Per-row bytes: 2x double-buffered bf16 input + 2x bf16 output
    # + ~3 full-width f32 temporaries inside the kernel.
    per_row = 2 * (C4 * 2) + 2 * (C4 * 2) + 3 * (C4 * 4)
    budget = int(vmem_limit * 0.75) - weight_bytes
    tm = budget // per_row if budget > 0 else 8
    tm = max(8, min(4096, (tm // 8) * 8))
    # v7x megacore: keep at least 2 grid steps so both TensorCores get work.
    if M > 8:
        half = (((M + 1) // 2) + 7) // 8 * 8
        tm = min(tm, max(8, half))
    return tm, vmem_limit


def simple_uvit_block(x_nchw, params, *, eps=EPS):
    B, C, H, W = x_nchw.shape
    C4 = 4 * C
    # Spatial dims after F.pad(0,1,0,1) + Conv2d(k=2,s=2); output is (2hd, 2wd).
    hd = (H - 1) // 2 + 1
    wd_ = (W - 1) // 2 + 1
    H2, W2 = 2 * hd, 2 * wd_

    # ---- pack: ONE fused transpose+cast, NCHW f32 -> (M, 4C) bf16 ----------
    xp = x_nchw
    if H2 != H or W2 != W:
        # Zero pad (only the genuinely-consumed rows/cols are kept).  Padded
        # pixels stay exactly 0 under RMSNorm, so normalizing after the pad
        # matches PyTorch's norm-then-pad order.
        xp = jnp.pad(xp, ((0, 0), (0, 0), (0, H2 - H), (0, W2 - W)))
    M = B * hd * wd_
    patches = (xp.reshape(B, C, hd, 2, wd_, 2)
                 .transpose(0, 2, 4, 3, 5, 1)            # (B, hd, wd, di, dj, C)
                 .reshape(M, C4)
                 .astype(jnp.bfloat16))
    # NOTE: RMSNorm statistics are computed from bf16-quantized activations
    # (deliberate: halves kernel input HBM traffic; within test tolerance).

    tm, vmem_limit = _pick_tile_and_vmem(M, C)
    M_pad = pl.cdiv(M, tm) * tm
    if M_pad != M:
        patches = jnp.pad(patches, ((0, M_pad - M), (0, 0)))

    # ---- weights: repack per-position + fold RMSNorm gammas into rows ------
    g1 = params["g1"].astype(jnp.float32)
    g2 = params["g2"].astype(jnp.float32)
    #   Conv2d   weight (O,I,kh,kw) -> (p*C + I, O), rows scaled by g1[I]
    wd_flat = jnp.transpose(params["wd"].astype(jnp.float32), (2, 3, 1, 0)).reshape(C4, C)
    wd_flat = (wd_flat * jnp.tile(g1, 4)[:, None]).astype(jnp.bfloat16)
    #   ConvT2d  weight (I,O,kh,kw) -> (I, p*C + O), rows scaled by g2[I]
    wu_flat = jnp.transpose(params["wu"].astype(jnp.float32), (0, 2, 3, 1)).reshape(C, C4)
    wu_flat = (wu_flat * g2[:, None]).astype(jnp.bfloat16)
    bd = params["bd"].astype(jnp.float32).reshape(1, C)
    bu = jnp.tile(params["bu"].astype(jnp.float32), 4).reshape(1, C4)

    cost = pl.CostEstimate(
        flops=int(2 * 2 * M_pad * C4 * C),               # two fused matmuls
        transcendentals=int(5 * M_pad),                  # rsqrt per row / position
        bytes_accessed=int(M_pad * C4 * 2 * 2            # bf16 in + bf16 out
                           + 2 * C4 * C * 2              # bf16 weights
                           + (C4 + C) * 4))              # f32 biases

    out = pl.pallas_call(
        functools.partial(_fused_uvit_kernel, eps=eps, c=C),
        out_shape=jax.ShapeDtypeStruct((M_pad, C4), jnp.bfloat16),
        grid=(M_pad // tm,),
        in_specs=[
            pl.BlockSpec((tm, C4), lambda i: (i, 0)),                 # patches
            pl.BlockSpec((C4, C), lambda i: (0, 0),
                         pipeline_mode=pl.Buffered(1)),               # conv weight (const)
            pl.BlockSpec((1, C), lambda i: (0, 0)),                   # conv bias
            pl.BlockSpec((C, C4), lambda i: (0, 0),
                         pipeline_mode=pl.Buffered(1)),               # conv-T weight (const)
            pl.BlockSpec((1, C4), lambda i: (0, 0)),                  # conv-T bias (tiled x4)
        ],
        out_specs=pl.BlockSpec((tm, C4), lambda i: (i, 0)),
        compiler_params=pltpu.CompilerParams(
            dimension_semantics=("parallel",),
            vmem_limit_bytes=int(vmem_limit)),
        cost_estimate=cost,
    )(patches, wd_flat, bd, wu_flat, bu)

    # ---- unpack: ONE fused transpose+cast, (M,4C) bf16 -> NCHW f32 ---------
    # Padded rows (M_pad - M) are sliced off BEFORE the unpack.
    out = (out[:M]
           .reshape(B, hd, wd_, 2, 2, C)                 # (b, i, j, di, dj, o)
           .transpose(0, 5, 1, 3, 2, 4)                  # (b, o, i, di, j, dj)
           .reshape(B, C, H2, W2)
           .astype(jnp.float32))
    return out


def ref_forward(x_nchw, params, eps=EPS):
    """Pure-JAX f32 reference mirroring the PyTorch module."""
    x = jnp.transpose(x_nchw, (0, 2, 3, 1)).astype(jnp.float32)
    v1 = jnp.mean(x * x, axis=-1, keepdims=True)
    xn = x * lax.rsqrt(v1 + eps) * params["g1"]
    xn = jnp.transpose(xn, (0, 3, 1, 2))
    xn = jnp.pad(xn, ((0, 0), (0, 0), (0, 1), (0, 1)))        # F.pad (0,1,0,1)
    y = lax.conv_general_dilated(
        xn, params["wd"], window_strides=(2, 2), padding="VALID",
        dimension_numbers=("NCHW", "OIHW", "NCHW"))
    y = y + params["bd"][None, :, None, None]
    y = jnp.transpose(y, (0, 2, 3, 1))
    v2 = jnp.mean(y * y, axis=-1, keepdims=True)
    yn = y * lax.rsqrt(v2 + eps) * params["g2"]
    # ConvTranspose2d(k=2,s=2): out[b, 2i+di, 2j+dj, o] = sum_c yn[b,i,j,c]*W[c,o,di,dj]
    t = jnp.einsum("bijc,cokl->bikjlo", yn, params["wu"])
    Bn, Hd, _, Wd, _, Co = t.shape
    up = t.reshape(Bn, Hd * 2, Wd * 2, Co) + params["bu"]
    return jnp.transpose(up, (0, 3, 1, 2))


if __name__ == "__main__":
    B, C, H, W = 2, 8, 16, 16
    key = jax.random.PRNGKey(0)
    kx, k1, k2, k3, k4 = jax.random.split(key, 5)

    # Deterministic parameter init (module __init__ shapes, use_bias=True,
    # elementwise_affine=True -> RMSNorm weights init to ones).
    params = {
        "g1": jnp.ones((C,), jnp.float32),                              # RMSNorm (downsample)
        "wd": 0.1 * jax.random.normal(k1, (C, C, 2, 2), jnp.float32),   # Conv2d weight (O,I,2,2)
        "bd": 0.1 * jax.random.normal(k2, (C,), jnp.float32),           # Conv2d bias
        "g2": jnp.ones((C,), jnp.float32),                              # RMSNorm (upsample)
        "wu": 0.1 * jax.random.normal(k3, (C, C, 2, 2), jnp.float32),   # ConvTranspose2d weight (I,O,2,2)
        "bu": 0.1 * jax.random.normal(k4, (C,), jnp.float32),           # ConvTranspose2d bias
    }
    x = jax.random.normal(kx, (B, C, H, W), jnp.float32)

    out = jax.block_until_ready(simple_uvit_block(x, params))
    ref = jax.block_until_ready(ref_forward(x, params))

    assert out.shape == (B, C, H, W), out.shape
    # Tolerance reflects bf16 kernel I/O + bf16 matmul inputs (f32 statistics
    # and f32 accumulation inside the kernel).
    err = float(jnp.max(jnp.abs(out - ref)))
    assert jnp.allclose(out, ref, atol=5e-2, rtol=5e-2), err
    print("KERNEL_OK")
</pallas_src>

<mosaic_0001>
module attributes {stable_mosaic.version = 11 : i64} {
  func.func @_fused_uvit_kernel(%arg0: i32, %arg1: memref<64x32xbf16, #tpu.memory_space<vmem>>, %arg2: memref<32x8xbf16, #tpu.memory_space<vmem>>, %arg3: memref<1x8xf32, #tpu.memory_space<vmem>>, %arg4: memref<8x32xbf16, #tpu.memory_space<vmem>>, %arg5: memref<1x32xf32, #tpu.memory_space<vmem>>, %arg6: memref<64x32xbf16, #tpu.memory_space<vmem>>) attributes {dimension_semantics = [#tpu.dimension_semantics<parallel>], iteration_bounds = array<i64: 2>, scalar_prefetch = 0 : i64, scratch_operands = 0 : i64, tpu.core_type = #tpu.core_type<tc>, window_params = [{transform_indices = @transform_0, window_bounds = array<i64: 64, 32>}, {pipeline_mode = #tpu.pipeline_mode<synchronous>, transform_indices = @transform_1, window_bounds = array<i64: 32, 8>}, {pipeline_mode = #tpu.pipeline_mode<synchronous>, transform_indices = @transform_2, window_bounds = array<i64: 1, 8>}, {pipeline_mode = #tpu.pipeline_mode<synchronous>, transform_indices = @transform_3, window_bounds = array<i64: 8, 32>}, {pipeline_mode = #tpu.pipeline_mode<synchronous>, transform_indices = @transform_4, window_bounds = array<i64: 1, 32>}, {transform_indices = @transform_5, window_bounds = array<i64: 64, 32>}]} {
    %c0 = arith.constant 0 : index
    %c0_0 = arith.constant 0 : index
    %0 = vector.load %arg1[%c0, %c0_0] : memref<64x32xbf16, #tpu.memory_space<vmem>>, vector<64x8xbf16>
    %1 = arith.extf %0 : vector<64x8xbf16> to vector<64x8xf32>
    %2 = arith.mulf %1, %1 : vector<64x8xf32>
    %cst = arith.constant dense<0.000000e+00> : vector<64xf32>
    %3 = vector.multi_reduction <add>, %2, %cst [1] : vector<64x8xf32> to vector<64xf32>
    %4 = vector.shape_cast %3 : vector<64xf32> to vector<64x1xf32>
    %cst_1 = arith.constant 8.000000e+00 : f32
    %5 = vector.broadcast %cst_1 : f32 to vector<64x1xf32>
    %6 = arith.divf %4, %5 : vector<64x1xf32>
    %cst_2 = arith.constant 9.99999997E-7 : f32
    %7 = vector.broadcast %cst_2 : f32 to vector<64x1xf32>
    %8 = arith.addf %6, %7 : vector<64x1xf32>
    %9 = math.rsqrt %8 : vector<64x1xf32>
    %10 = vector.broadcast %9 : vector<64x1xf32> to vector<64x8xf32>
    %11 = arith.mulf %1, %10 : vector<64x8xf32>
    %12 = arith.truncf %11 : vector<64x8xf32> to vector<64x8xbf16>
    %c0_3 = arith.constant 0 : index
    %c8 = arith.constant 8 : index
    %13 = vector.load %arg1[%c0_3, %c8] : memref<64x32xbf16, #tpu.memory_space<vmem>>, vector<64x8xbf16>
    %14 = arith.extf %13 : vector<64x8xbf16> to vector<64x8xf32>
    %15 = arith.mulf %14, %14 : vector<64x8xf32>
    %cst_4 = arith.constant dense<0.000000e+00> : vector<64xf32>
    %16 = vector.multi_reduction <add>, %15, %cst_4 [1] : vector<64x8xf32> to vector<64xf32>
    %17 = vector.shape_cast %16 : vector<64xf32> to vector<64x1xf32>
    %cst_5 = arith.constant 8.000000e+00 : f32
    %18 = vector.broadcast %cst_5 : f32 to vector<64x1xf32>
    %19 = arith.divf %17, %18 : vector<64x1xf32>
    %cst_6 = arith.constant 9.99999997E-7 : f32
    %20 = vector.broadcast %cst_6 : f32 to vector<64x1xf32>
    %21 = arith.addf %19, %20 : vector<64x1xf32>
    %22 = math.rsqrt %21 : vector<64x1xf32>
    %23 = vector.broadcast %22 : vector<64x1xf32> to vector<64x8xf32>
    %24 = arith.mulf %14, %23 : vector<64x8xf32>
    %25 = arith.truncf %24 : vector<64x8xf32> to vector<64x8xbf16>
    %c0_7 = arith.constant 0 : index
    %c16 = arith.constant 16 : index
    %26 = vector.load %arg1[%c0_7, %c16] : memref<64x32xbf16, #tpu.memory_space<vmem>>, vector<64x8xbf16>
    %27 = arith.extf %26 : vector<64x8xbf16> to vector<64x8xf32>
    %28 = arith.mulf %27, %27 : vector<64x8xf32>
    %cst_8 = arith.constant dense<0.000000e+00> : vector<64xf32>
    %29 = vector.multi_reduction <add>, %28, %cst_8 [1] : vector<64x8xf32> to vector<64xf32>
    %30 = vector.shape_cast %29 : vector<64xf32> to vector<64x1xf32>
    %cst_9 = arith.constant 8.000000e+00 : f32
    %31 = vector.broadcast %cst_9 : f32 to vector<64x1xf32>
    %32 = arith.divf %30, %31 : vector<64x1xf32>
    %cst_10 = arith.constant 9.99999997E-7 : f32
    %33 = vector.broadcast %cst_10 : f32 to vector<64x1xf32>
    %34 = arith.addf %32, %33 : vector<64x1xf32>
    %35 = math.rsqrt %34 : vector<64x1xf32>
    %36 = vector.broadcast %35 : vector<64x1xf32> to vector<64x8xf32>
    %37 = arith.mulf %27, %36 : vector<64x8xf32>
    %38 = arith.truncf %37 : vector<64x8xf32> to vector<64x8xbf16>
    %c0_11 = arith.constant 0 : index
    %c24 = arith.constant 24 : index
    %39 = vector.load %arg1[%c0_11, %c24] : memref<64x32xbf16, #tpu.memory_space<vmem>>, vector<64x8xbf16>
    %40 = arith.extf %39 : vector<64x8xbf16> to vector<64x8xf32>
    %41 = arith.mulf %40, %40 : vector<64x8xf32>
    %cst_12 = arith.constant dense<0.000000e+00> : vector<64xf32>
    %42 = vector.multi_reduction <add>, %41, %cst_12 [1] : vector<64x8xf32> to vector<64xf32>
    %43 = vector.shape_cast %42 : vector<64xf32> to vector<64x1xf32>
    %cst_13 = arith.constant 8.000000e+00 : f32
    %44 = vector.broadcast %cst_13 : f32 to vector<64x1xf32>
    %45 = arith.divf %43, %44 : vector<64x1xf32>
    %cst_14 = arith.constant 9.99999997E-7 : f32
    %46 = vector.broadcast %cst_14 : f32 to vector<64x1xf32>
    %47 = arith.addf %45, %46 : vector<64x1xf32>
    %48 = math.rsqrt %47 : vector<64x1xf32>
    %49 = vector.broadcast %48 : vector<64x1xf32> to vector<64x8xf32>
    %50 = arith.mulf %40, %49 : vector<64x8xf32>
    %51 = arith.truncf %50 : vector<64x8xf32> to vector<64x8xbf16>
    %52 = tpu.concatenate %12, %25, %38, %51 in 1 : vector<64x8xbf16>, vector<64x8xbf16>, vector<64x8xbf16>, vector<64x8xbf16> -> vector<64x32xbf16>
    %c0_15 = arith.constant 0 : index
    %c0_16 = arith.constant 0 : index
    %53 = vector.load %arg2[%c0_15, %c0_16] : memref<32x8xbf16, #tpu.memory_space<vmem>>, vector<32x8xbf16>
    %cst_17 = arith.constant dense<0.000000e+00> : vector<64x8xf32>
    %54 = tpu.matmul %52, %53, %cst_17 {dimension_numbers = #tpu.dot_dimension_numbers<[1], [0], [0], [1], [0, 0, 1, 1], [], []>} : vector<64x32xbf16>, vector<32x8xbf16>, vector<64x8xf32> -> vector<64x8xf32>
    %c0_18 = arith.constant 0 : index
    %c0_19 = arith.constant 0 : index
    %55 = vector.load %arg3[%c0_18, %c0_19] : memref<1x8xf32, #tpu.memory_space<vmem>>, vector<1x8xf32>
    %56 = vector.broadcast %55 : vector<1x8xf32> to vector<64x8xf32>
    %57 = arith.addf %54, %56 : vector<64x8xf32>
    %58 = arith.mulf %57, %57 : vector<64x8xf32>
    %cst_20 = arith.constant dense<0.000000e+00> : vector<64xf32>
    %59 = vector.multi_reduction <add>, %58, %cst_20 [1] : vector<64x8xf32> to vector<64xf32>
    %60 = vector.shape_cast %59 : vector<64xf32> to vector<64x1xf32>
    %cst_21 = arith.constant 8.000000e+00 : f32
    %61 = vector.broadcast %cst_21 : f32 to vector<64x1xf32>
    %62 = arith.divf %60, %61 : vector<64x1xf32>
    %cst_22 = arith.constant 9.99999997E-7 : f32
    %63 = vector.broadcast %cst_22 : f32 to vector<64x1xf32>
    %64 = arith.addf %62, %63 : vector<64x1xf32>
    %65 = math.rsqrt %64 : vector<64x1xf32>
    %66 = vector.broadcast %65 : vector<64x1xf32> to vector<64x8xf32>
    %67 = arith.mulf %57, %66 : vector<64x8xf32>
    %68 = arith.truncf %67 : vector<64x8xf32> to vector<64x8xbf16>
    %c0_23 = arith.constant 0 : index
    %c0_24 = arith.constant 0 : index
    %69 = vector.load %arg4[%c0_23, %c0_24] : memref<8x32xbf16, #tpu.memory_space<vmem>>, vector<8x32xbf16>
    %cst_25 = arith.constant dense<0.000000e+00> : vector<64x32xf32>
    %70 = tpu.matmul %68, %69, %cst_25 {dimension_numbers = #tpu.dot_dimension_numbers<[1], [0], [0], [1], [0, 0, 1, 1], [], []>} : vector<64x8xbf16>, vector<8x32xbf16>, vector<64x32xf32> -> vector<64x32xf32>
    %c0_26 = arith.constant 0 : index
    %c0_27 = arith.constant 0 : index
    %71 = vector.load %arg5[%c0_26, %c0_27] : memref<1x32xf32, #tpu.memory_space<vmem>>, vector<1x32xf32>
    %72 = vector.broadcast %71 : vector<1x32xf32> to vector<64x32xf32>
    %73 = arith.addf %70, %72 : vector<64x32xf32>
    %74 = arith.truncf %73 : vector<64x32xf32> to vector<64x32xbf16>
    %c0_28 = arith.constant 0 : index
    %c0_29 = arith.constant 0 : index
    %75 = vector.load %arg6[%c0_28, %c0_29] : memref<64x32xbf16, #tpu.memory_space<vmem>>, vector<64x32xbf16>
    tpu.vector_store %arg6[%c0_28, %c0_29], %74 {strides = array<i32>} : memref<64x32xbf16, #tpu.memory_space<vmem>>, vector<64x32xbf16>,
    return
  }
  func.func @transform_0(%arg0: i32) -> (i32, i32) {
    %c0_i32 = arith.constant 0 : i32
    %c0_i32_0 = arith.constant 0 : i32
    return %arg0, %c0_i32 : i32, i32
  }
  func.func @transform_1(%arg0: i32) -> (i32, i32) {
    %c0_i32 = arith.constant 0 : i32
    %c0_i32_0 = arith.constant 0 : i32
    %c0_i32_1 = arith.constant 0 : i32
    return %c0_i32, %c0_i32_0 : i32, i32
  }
  func.func @transform_2(%arg0: i32) -> (i32, i32) {
    %c0_i32 = arith.constant 0 : i32
    %c0_i32_0 = arith.constant 0 : i32
    %c0_i32_1 = arith.constant 0 : i32
    return %c0_i32, %c0_i32_0 : i32, i32
  }
  func.func @transform_3(%arg0: i32) -> (i32, i32) {
    %c0_i32 = arith.constant 0 : i32
    %c0_i32_0 = arith.constant 0 : i32
    %c0_i32_1 = arith.constant 0 : i32
    return %c0_i32, %c0_i32_0 : i32, i32
  }
  func.func @transform_4(%arg0: i32) -> (i32, i32) {
    %c0_i32 = arith.constant 0 : i32
    %c0_i32_0 = arith.constant 0 : i32
    %c0_i32_1 = arith.constant 0 : i32
    return %c0_i32, %c0_i32_0 : i32, i32
  }
  func.func @transform_5(%arg0: i32) -> (i32, i32) {
    %c0_i32 = arith.constant 0 : i32
    %c0_i32_0 = arith.constant 0 : i32
    return %arg0, %c0_i32 : i32, i32
  }
}

</mosaic_0001>

<llo_original>
// kernel: tpu_custom_call.1
$region0: #{tpu_custom_call.1}
  #allocation0 [shape = 'u32[]', space=smem, size = 0x4, offset = 0x4, fixed_abs, tag = 'smem constant byte address 0x4 - core index']
  #allocation1 [shape = 'u32[72,128]{1,0:T(1,128)}', space=vmem, size = 0x9000, scoped, tag = 'internal scratch']
  %s0 = inlined_call_operand.vmem [shape: bf16[128,32], index: 0, kind: input, shape index: {}]
  %s1 = inlined_call_operand.vmem [shape: bf16[32,8], index: 1, kind: input, shape index: {}]
  %s2 = inlined_call_operand.vmem [shape: f32[1,8], index: 2, kind: input, shape index: {}]
  %s3 = inlined_call_operand.vmem [shape: bf16[8,32], index: 3, kind: input, shape index: {}]
  %s4 = inlined_call_operand.vmem [shape: f32[1,32], index: 4, kind: input, shape index: {}]
  %s5 = inlined_call_operand.vmem [shape: bf16[128,32], index: 5, kind: output, shape index: {}]
  %s6 = sld [smem:[#allocation0]]
  $region53: #{tpu_custom_call.1} parent=0
    _
  %s8 = ssub.s32 1, %s6
  %s9 = scalar_select 0, %s8, %s6
  loop: start=0, step=1, limit=4
  $region2: #{tpu_custom_call.1} parent=0 // loop_pre_header
    _
  $region3: #{tpu_custom_call.1} parent=0 // loop_header
    %s11 = sphi 0, %s15
    %p12 = scmp.ge.s32.totalorder %s11, 4
    %s21 = sphi 0, %s23
    %s24 = sphi 0, %s21
    %s25 = sphi 0, %s24
    %s41 = sphi 0, %s25
    %s45 = sphi 0, %s45
    %s47 = sphi 0, %s45
    %s48 = sphi 0, %s47
    %s62 = sphi 0, %s48
    %s66 = sphi 0, %s66
    %s68 = sphi 0, %s66
    %s69 = sphi 0, %s68
    %s83 = sphi 0, %s69
    %s87 = sphi 0, %s87
    %s89 = sphi 0, %s87
    %s90 = sphi 0, %s89
    %s104 = sphi 0, %s90
    %s108 = sphi 0, %s108
    %s110 = sphi 0, %s108
    %s111 = sphi 0, %s110
    %s125 = sphi 0, %s111
    %s131 = sphi 0, %s133
    %s134 = sphi 0, %s131
    %s135 = sphi 0, %s134
    %s151 = sphi 0, %s135
  $region4: #{tpu_custom_call.1} parent=0 // loop_header_branch
    %14 = sbr.rel (%p12) target = $region8
  $region5: #{tpu_custom_call.1} parent=0 // loop_body
    %s16 = ssub.s32 %s11, 1
    %s17 = ssub.s32 %s11, 2
    %s18 = sadd.s32 %s11, 1
    %s19 = ssub.s32 %s11, %s18
    %p20 = scmp.eq.s32.totalorder %s19, 0
    %s22 = sadd.s32 %s21, 1
    %s23 = scalar_select %p20, %s21, %s22
    %p26 = pneg %p20
    %p27 = scmp.eq.s32.totalorder %s11, 1
    %p28 = por %p26, %p27
    %p29 = scmp.ne.s32.totalorder %s21, %s24
    %p30 = scmp.eq.s32.totalorder %s11, 0
    %p31 = por %p29, %p30
    %p32 = scmp.ne.s32.totalorder %s21, %s24
    %p33 = scmp.eq.s32.totalorder %s16, 1
    %p34 = por %p32, %p33
    %p35 = scmp.ne.s32.totalorder %s24, %s25
    %p36 = scmp.eq.s32.totalorder %s16, 0
    %p37 = por %p35, %p36
    %p38 = scmp.ne.s32.totalorder %s24, %s25
    %p39 = scmp.eq.s32.totalorder %s17, 1
    %p40 = por %p38, %p39
    %p42 = scmp.ne.s32.totalorder %s25, %s41
    %p43 = scmp.eq.s32.totalorder %s17, 0
    %p44 = por %p42, %p43
    %s46 = sadd.s32 %s45, 1
    %p49 = scmp.eq.s32.totalorder %s11, 1
    %p50 = scmp.ne.s32.totalorder %s45, %s47
    %p51 = scmp.eq.s32.totalorder %s11, 0
    %p52 = por %p50, %p51
    %p53 = scmp.ne.s32.totalorder %s45, %s47
    %p54 = scmp.eq.s32.totalorder %s16, 1
    %p55 = por %p53, %p54
    %p56 = scmp.ne.s32.totalorder %s47, %s48
    %p57 = scmp.eq.s32.totalorder %s16, 0
    %p58 = por %p56, %p57
    %p59 = scmp.ne.s32.totalorder %s47, %s48
    %p60 = scmp.eq.s32.totalorder %s17, 1
    %p61 = por %p59, %p60
    %p63 = scmp.ne.s32.totalorder %s48, %s62
    %p64 = scmp.eq.s32.totalorder %s17, 0
    %p65 = por %p63, %p64
    %s67 = sadd.s32 %s66, 1
    %p70 = scmp.eq.s32.totalorder %s11, 1
    %p71 = scmp.ne.s32.totalorder %s66, %s68
    %p72 = scmp.eq.s32.totalorder %s11, 0
    %p73 = por %p71, %p72
    %p74 = scmp.ne.s32.totalorder %s66, %s68
    %p75 = scmp.eq.s32.totalorder %s16, 1
    %p76 = por %p74, %p75
    %p77 = scmp.ne.s32.totalorder %s68, %s69
    %p78 = scmp.eq.s32.totalorder %s16, 0
    %p79 = por %p77, %p78
    %p80 = scmp.ne.s32.totalorder %s68, %s69
    %p81 = scmp.eq.s32.totalorder %s17, 1
    %p82 = por %p80, %p81
    %p84 = scmp.ne.s32.totalorder %s69, %s83
    %p85 = scmp.eq.s32.totalorder %s17, 0
    %p86 = por %p84, %p85
    %s88 = sadd.s32 %s87, 1
    %p91 = scmp.eq.s32.totalorder %s11, 1
    %p92 = scmp.ne.s32.totalorder %s87, %s89
    %p93 = scmp.eq.s32.totalorder %s11, 0
    %p94 = por %p92, %p93
    %p95 = scmp.ne.s32.totalorder %s87, %s89
    %p96 = scmp.eq.s32.totalorder %s16, 1
    %p97 = por %p95, %p96
    %p98 = scmp.ne.s32.totalorder %s89, %s90
    %p99 = scmp.eq.s32.totalorder %s16, 0
    %p100 = por %p98, %p99
    %p101 = scmp.ne.s32.totalorder %s89, %s90
    %p102 = scmp.eq.s32.totalorder %s17, 1
    %p103 = por %p101, %p102
    %p105 = scmp.ne.s32.totalorder %s90, %s104
    %p106 = scmp.eq.s32.totalorder %s17, 0
    %p107 = por %p105, %p106
    %s109 = sadd.s32 %s108, 1
    %p112 = scmp.eq.s32.totalorder %s11, 1
    %p113 = scmp.ne.s32.totalorder %s108, %s110
    %p114 = scmp.eq.s32.totalorder %s11, 0
    %p115 = por %p113, %p114
    %p116 = scmp.ne.s32.totalorder %s108, %s110
    %p117 = scmp.eq.s32.totalorder %s16, 1
    %p118 = por %p116, %p117
    %p119 = scmp.ne.s32.totalorder %s110, %s111
    %p120 = scmp.eq.s32.totalorder %s16, 0
    %p121 = por %p119, %p120
    %p122 = scmp.ne.s32.totalorder %s110, %s111
    %p123 = scmp.eq.s32.totalorder %s17, 1
    %p124 = por %p122, %p123
    %p126 = scmp.ne.s32.totalorder %s111, %s125
    %p127 = scmp.eq.s32.totalorder %s17, 0
    %p128 = por %p126, %p127
    %s129 = ssub.s32 %s11, %s18
    %p130 = scmp.eq.s32.totalorder %s129, 0
    %s132 = sadd.s32 %s131, 1
    %s133 = scalar_select %p130, %s131, %s132
    %p136 = pneg %p130
    %p137 = scmp.eq.s32.totalorder %s11, 1
    %p138 = por %p136, %p137
    %p139 = scmp.ne.s32.totalorder %s131, %s134
    %p140 = scmp.eq.s32.totalorder %s11, 0
    %p141 = por %p139, %p140
    %p142 = scmp.ne.s32.totalorder %s131, %s134
    %p143 = scmp.eq.s32.totalorder %s16, 1
    %p144 = por %p142, %p143
    %p145 = scmp.ne.s32.totalorder %s134, %s135
    %p146 = scmp.eq.s32.totalorder %s16, 0
    %p147 = por %p145, %p146
    %p148 = scmp.ne.s32.totalorder %s134, %s135
    %p149 = scmp.eq.s32.totalorder %s17, 1
    %p150 = por %p148, %p149
    %p152 = scmp.ne.s32.totalorder %s135, %s151
    %p153 = scmp.eq.s32.totalorder %s17, 0
    %p154 = por %p152, %p153
    %p155 = scmp.le.s32.totalorder 1, %s11
    %p156 = scmp.lt.s32.totalorder %s11, 3
    %p157 = pnand %p155, %p156
    %p158 = pneg %p157
    // Predicated region
    $region9: #{tpu_custom_call.1} parent=5 // pred_check
      _
    $region10: #{tpu_custom_call.1} parent=5 // pred_check_branch
      %160 = sbr.rel (%p157) target = $region12
    $region11: #{tpu_custom_call.1} parent=5 // pred_region
      %s161 = ssub.s32 %s11, 1
      // Predicated region
      $region13: #{tpu_custom_call.1} parent=11 // pred_check
        %p162 = pneg %p58
      $region14: #{tpu_custom_call.1} parent=11 // pred_check_branch
        %164 = sbr.rel (%p162) target = $region16
      $region15: #{tpu_custom_call.1} parent=11 // pred_region
        _
      $region16: #{tpu_custom_call.1} parent=11 // pred_fallthru
        _
      // Predicated region
      $region17: #{tpu_custom_call.1} parent=11 // pred_check
        %p165 = pneg %p79
      $region18: #{tpu_custom_call.1} parent=11 // pred_check_branch
        %167 = sbr.rel (%p165) target = $region20
      $region19: #{tpu_custom_call.1} parent=11 // pred_region
        _
      $region20: #{tpu_custom_call.1} parent=11 // pred_fallthru
        _
      // Predicated region
      $region21: #{tpu_custom_call.1} parent=11 // pred_check
        %p168 = pneg %p100
      $region22: #{tpu_custom_call.1} parent=11 // pred_check_branch
        %170 = sbr.rel (%p168) target = $region24
      $region23: #{tpu_custom_call.1} parent=11 // pred_region
        _
      $region24: #{tpu_custom_call.1} parent=11 // pred_fallthru
        _
      // Predicated region
      $region25: #{tpu_custom_call.1} parent=11 // pred_check
        %p171 = pneg %p121
      $region26: #{tpu_custom_call.1} parent=11 // pred_check_branch
        %173 = sbr.rel (%p171) target = $region28
      $region27: #{tpu_custom_call.1} parent=11 // pred_region
        _
      $region28: #{tpu_custom_call.1} parent=11 // pred_fallthru
        _
    $region12: #{tpu_custom_call.1} parent=5 // pred_fallthru
      _
    %p174 = scmp.lt.s32.totalorder %s11, 2
    // Predicated region
    $region29: #{tpu_custom_call.1} parent=5 // pred_check
      %p175 = pneg %p174
    $region30: #{tpu_custom_call.1} parent=5 // pred_check_branch
      %177 = sbr.rel (%p175) target = $region32
    $region31: #{tpu_custom_call.1} parent=5 // pred_region
      // Predicated region
      $region33: #{tpu_custom_call.1} parent=31 // pred_check
        %p178 = pneg %p31
      $region34: #{tpu_custom_call.1} parent=31 // pred_check_branch
        %180 = sbr.rel (%p178) target = $region36
      $region35: #{tpu_custom_call.1} parent=31 // pred_region
        %s181 = smul.u32 8, %s11
        %p182 = scmp.lt.s32.totalorder %s181, 15
        %s183 = scalar_select %p182, %s181, 15
        %s184 = smul.addr %s183, 4
        %s185 = scalar_lea.vmem %s0, %s184
        %s186 = smul.u32 8, %s11
      $region36: #{tpu_custom_call.1} parent=31 // pred_fallthru
        _
    $region32: #{tpu_custom_call.1} parent=5 // pred_fallthru
      _
    %p187 = scmp.le.s32.totalorder 1, %s11
    %p188 = scmp.lt.s32.totalorder %s11, 3
    %p189 = pnand %p187, %p188
    %p190 = pneg %p189
    // Predicated region
    $region37: #{tpu_custom_call.1} parent=5 // pred_check
      _
    $region38: #{tpu_custom_call.1} parent=5 // pred_check_branch
      %192 = sbr.rel (%p189) target = $region40
    $region39: #{tpu_custom_call.1} parent=5 // pred_region
      %s193 = ssub.s32 %s11, 1
      %s194 = smul.u32 8, %s16
      %p195 = scmp.lt.s32.totalorder %s194, 15
      %s196 = scalar_select %p195, %s194, 15
      %s197 = smul.addr %s196, 4
      %s198 = scalar_lea.vmem %s0, %s197
      %p199 = pneg %p37
      %p200 = pneg %p34
      %p201 = pneg %p58
      %p202 = pneg %p55
      %p203 = pneg %p79
      %p204 = pneg %p76
      %p205 = pneg %p100
      %p206 = pneg %p97
      %p207 = pneg %p121
      %p208 = pneg %p118
      %p209 = pneg %p147
      %p210 = pneg %p144
      %s211 = smul.u32 8, %s16
      %p212 = scmp.lt.s32.totalorder %s211, 15
      %s213 = scalar_select %p212, %s211, 15
      %s214 = smul.addr %s213, 4
      %s215 = scalar_lea.vmem %s5, %s214
      %s216 = smul.u32 8, %s16
      %p217 = scmp.lt.s32.totalorder %s216, 15
      %s218 = scalar_select %p217, %s216, 15
      %s219 = smul.addr %s218, 4
      %s220 = scalar_lea.vmem %s0, %s219
      %s221 = smul.u32 8, %s16
      %s222 = smul.u32 8, %s16
      %p223 = scmp.lt.s32.totalorder %s222, 15
      %s224 = scalar_select %p223, %s222, 15
      %s225 = smul.addr %s224, 4
      %s226 = scalar_lea.vmem %s5, %s225
      %s227 = smul.u32 8, %s16
      %v229 = vld [vmem:[%s220] sm:$0xf]
      %v230 = vld [vmem:[%s220 + $0x4] sm:$0xf]
      %v231 = vld [vmem:[%s220 + $0x8] sm:$0xf]
      %v232 = vld [vmem:[%s220 + $0xc] sm:$0xf]
      %v233 = vld [vmem:[%s220 + $0x10] sm:$0xf]
      %v234 = vld [vmem:[%s220 + $0x14] sm:$0xf]
      %v235 = vld [vmem:[%s220 + $0x18] sm:$0xf]
      %v236 = vld [vmem:[%s220 + $0x1c] sm:$0xf]
      %v237 = vunpack.c.l.bf16 %v229
      %v238 = vunpack.c.l.bf16 %v230
      %v239 = vunpack.c.l.bf16 %v231
      %v240 = vunpack.c.l.bf16 %v232
      %v241 = vunpack.c.l.bf16 %v233
      %v242 = vunpack.c.l.bf16 %v234
      %v243 = vunpack.c.l.bf16 %v235
      %v244 = vunpack.c.l.bf16 %v236
      %v245 = vmul.f32 %v237, %v237
      %v246 = vmul.f32 %v238, %v238
      %v247 = vmul.f32 %v239, %v239
      %v248 = vmul.f32 %v240, %v240
      %v249 = vmul.f32 %v241, %v241
      %v250 = vmul.f32 %v242, %v242
      %v251 = vmul.f32 %v243, %v243
      %v252 = vmul.f32 %v244, %v244
      %vm253 = vcmask 64512
      %v254 = vsel %vm253, %v245, 0.0
      %255 = vadd.xlane.f32.xlu0 %v254
      %v256 = vpop.xlane.xlu0 %255
      %v257 = vsel %vm253, %v246, 0.0
      %258 = vadd.xlane.f32.xlu0 %v257
      %v259 = vpop.xlane.xlu0 %258
      %v260 = vsel %vm253, %v247, 0.0
      %261 = vadd.xlane.f32.xlu0 %v260
      %v262 = vpop.xlane.xlu0 %261
      %v263 = vsel %vm253, %v248, 0.0
      %264 = vadd.xlane.f32.xlu0 %v263
      %v265 = vpop.xlane.xlu0 %264
      %v266 = vsel %vm253, %v249, 0.0
      %267 = vadd.xlane.f32.xlu0 %v266
      %v268 = vpop.xlane.xlu0 %267
      %v269 = vsel %vm253, %v250, 0.0
      %270 = vadd.xlane.f32.xlu0 %v269
      %v271 = vpop.xlane.xlu0 %270
      %v272 = vsel %vm253, %v251, 0.0
      %273 = vadd.xlane.f32.xlu0 %v272
      %v274 = vpop.xlane.xlu0 %273
      %v275 = vsel %vm253, %v252, 0.0
      %276 = vadd.xlane.f32.xlu0 %v275
      %v277 = vpop.xlane.xlu0 %276
      %v278 = vrcp.pop 8.0
      %v279 = vmul.f32 8.0, %v278
      %v280 = vsub.f32 1.0, %v279
      %v281 = vmul.f32 %v278, %v280
      %v282 = vadd.f32 %v278, %v281
      %vm283 = vweird.f32 %v278
      %v284 = vsel %vm283, %v278, %v282
      %v285 = vmul.f32 %v256, %v284
      %v286 = vmul.f32 %v259, %v284
      %v287 = vmul.f32 %v262, %v284
      %v288 = vmul.f32 %v265, %v284
      %v289 = vmul.f32 %v268, %v284
      %v290 = vmul.f32 %v271, %v284
      %v291 = vmul.f32 %v274, %v284
      %v292 = vmul.f32 %v277, %v284
      %v293 = vadd.f32 %v285, 1e-06
      %v294 = vadd.f32 %v286, 1e-06
      %v295 = vadd.f32 %v287, 1e-06
      %v296 = vadd.f32 %v288, 1e-06
      %v297 = vadd.f32 %v289, 1e-06
      %v298 = vadd.f32 %v290, 1e-06
      %v299 = vadd.f32 %v291, 1e-06
      %v300 = vadd.f32 %v292, 1e-06
      %v301 = vrsqrt.pop %v293
      %v302 = vmul.f32 %v301, %v293
      %v303 = vmul.f32 %v302, %v301
      %v304 = vmul.f32 0.5, %v303
      %v305 = vsub.f32 1.5, %v304
      %v306 = vmul.f32 %v301, %v305
      %vm307 = vweird.f32 %v293
      %vm308 = vweird.f32 %v301
      %vm309 = vmor %vm307, %vm308
      %v310 = vsel %vm309, %v301, %v306
      %v311 = vrsqrt.pop %v294
      %v312 = vmul.f32 %v311, %v294
      %v313 = vmul.f32 %v312, %v311
      %v314 = vmul.f32 0.5, %v313
      %v315 = vsub.f32 1.5, %v314
      %v316 = vmul.f32 %v311, %v315
      %vm317 = vweird.f32 %v294
      %vm318 = vweird.f32 %v311
      %vm319 = vmor %vm317, %vm318
      %v320 = vsel %vm319, %v311, %v316
      %v321 = vrsqrt.pop %v295
      %v322 = vmul.f32 %v321, %v295
      %v323 = vmul.f32 %v322, %v321
      %v324 = vmul.f32 0.5, %v323
      %v325 = vsub.f32 1.5, %v324
      %v326 = vmul.f32 %v321, %v325
      %vm327 = vweird.f32 %v295
      %vm328 = vweird.f32 %v321
      %vm329 = vmor %vm327, %vm328
      %v330 = vsel %vm329, %v321, %v326
      %v331 = vrsqrt.pop %v296
      %v332 = vmul.f32 %v331, %v296
      %v333 = vmul.f32 %v332, %v331
      %v334 = vmul.f32 0.5, %v333
      %v335 = vsub.f32 1.5, %v334
      %v336 = vmul.f32 %v331, %v335
      %vm337 = vweird.f32 %v296
      %vm338 = vweird.f32 %v331
      %vm339 = vmor %vm337, %vm338
      %v340 = vsel %vm339, %v331, %v336
      %v341 = vrsqrt.pop %v297
      %v342 = vmul.f32 %v341, %v297
      %v343 = vmul.f32 %v342, %v341
      %v344 = vmul.f32 0.5, %v343
      %v345 = vsub.f32 1.5, %v344
      %v346 = vmul.f32 %v341, %v345
      %vm347 = vweird.f32 %v297
      %vm348 = vweird.f32 %v341
      %vm349 = vmor %vm347, %vm348
      %v350 = vsel %vm349, %v341, %v346
      %v351 = vrsqrt.pop %v298
      %v352 = vmul.f32 %v351, %v298
      %v353 = vmul.f32 %v352, %v351
      %v354 = vmul.f32 0.5, %v353
      %v355 = vsub.f32 1.5, %v354
      %v356 = vmul.f32 %v351, %v355
      %vm357 = vweird.f32 %v298
      %vm358 = vweird.f32 %v351
      %vm359 = vmor %vm357, %vm358
      %v360 = vsel %vm359, %v351, %v356
      %v361 = vrsqrt.pop %v299
      %v362 = vmul.f32 %v361, %v299
      %v363 = vmul.f32 %v362, %v361
      %v364 = vmul.f32 0.5, %v363
      %v365 = vsub.f32 1.5, %v364
      %v366 = vmul.f32 %v361, %v365
      %vm367 = vweird.f32 %v299
      %vm368 = vweird.f32 %v361
      %vm369 = vmor %vm367, %vm368
      %v370 = vsel %vm369, %v361, %v366
      %v371 = vrsqrt.pop %v300
      %v372 = vmul.f32 %v371, %v300
      %v373 = vmul.f32 %v372, %v371
      %v374 = vmul.f32 0.5, %v373
      %v375 = vsub.f32 1.5, %v374
      %v376 = vmul.f32 %v371, %v375
      %vm377 = vweird.f32 %v300
      %vm378 = vweird.f32 %v371
      %vm379 = vmor %vm377, %vm378
      %v380 = vsel %vm379, %v371, %v376
      %v381 = vmul.f32 %v237, %v310
      %v382 = vmul.f32 %v238, %v320
      %v383 = vmul.f32 %v239, %v330
      %v384 = vmul.f32 %v240, %v340
      %v385 = vmul.f32 %v241, %v350
      %v386 = vmul.f32 %v242, %v360
      %v387 = vmul.f32 %v243, %v370
      %v388 = vmul.f32 %v244, %v380
      %v389 = vpack.c.bf16 %v381, %v381
      %v390 = vpack.c.bf16 %v382, %v382
      %v391 = vpack.c.bf16 %v383, %v383
      %v392 = vpack.c.bf16 %v384, %v384
      %v393 = vpack.c.bf16 %v385, %v385
      %v394 = vpack.c.bf16 %v386, %v386
      %v395 = vpack.c.bf16 %v387, %v387
      %v396 = vpack.c.bf16 %v388, %v388
      %405 = vrot.lane.b32.xlu0 %v245, 120
      %v406 = vpop.permute.xlu0 %405
      %407 = vrot.lane.b32.xlu0 %v246, 120
      %v408 = vpop.permute.xlu0 %407
      %409 = vrot.lane.b32.xlu0 %v247, 120
      %v410 = vpop.permute.xlu0 %409
      %411 = vrot.lane.b32.xlu0 %v248, 120
      %v412 = vpop.permute.xlu0 %411
      %413 = vrot.lane.b32.xlu0 %v249, 120
      %v414 = vpop.permute.xlu0 %413
      %415 = vrot.lane.b32.xlu0 %v250, 120
      %v416 = vpop.permute.xlu0 %415
      %417 = vrot.lane.b32.xlu0 %v251, 120
      %v418 = vpop.permute.xlu0 %417
      %419 = vrot.lane.b32.xlu0 %v252, 120
      %v420 = vpop.permute.xlu0 %419
      %v429 = vsel %vm253, %v406, 0.0
      %430 = vadd.xlane.f32.xlu0 %v429
      %v431 = vpop.xlane.xlu0 %430
      %v432 = vsel %vm253, %v408, 0.0
      %433 = vadd.xlane.f32.xlu0 %v432
      %v434 = vpop.xlane.xlu0 %433
      %v435 = vsel %vm253, %v410, 0.0
      %436 = vadd.xlane.f32.xlu0 %v435
      %v437 = vpop.xlane.xlu0 %436
      %v438 = vsel %vm253, %v412, 0.0
      %439 = vadd.xlane.f32.xlu0 %v438
      %v440 = vpop.xlane.xlu0 %439
      %v441 = vsel %vm253, %v414, 0.0
      %442 = vadd.xlane.f32.xlu0 %v441
      %v443 = vpop.xlane.xlu0 %442
      %v444 = vsel %vm253, %v416, 0.0
      %445 = vadd.xlane.f32.xlu0 %v444
      %v446 = vpop.xlane.xlu0 %445
      %v447 = vsel %vm253, %v418, 0.0
      %448 = vadd.xlane.f32.xlu0 %v447
      %v449 = vpop.xlane.xlu0 %448
      %v450 = vsel %vm253, %v420, 0.0
      %451 = vadd.xlane.f32.xlu0 %v450
      %v452 = vpop.xlane.xlu0 %451
      %v453 = vmul.f32 %v431, %v284
      %v454 = vmul.f32 %v434, %v284
      %v455 = vmul.f32 %v437, %v284
      %v456 = vmul.f32 %v440, %v284
      %v457 = vmul.f32 %v443, %v284
      %v458 = vmul.f32 %v446, %v284
      %v459 = vmul.f32 %v449, %v284
      %v460 = vmul.f32 %v452, %v284
      %v461 = vadd.f32 %v453, 1e-06
      %v462 = vadd.f32 %v454, 1e-06
      %v463 = vadd.f32 %v455, 1e-06
      %v464 = vadd.f32 %v456, 1e-06
      %v465 = vadd.f32 %v457, 1e-06
      %v466 = vadd.f32 %v458, 1e-06
      %v467 = vadd.f32 %v459, 1e-06
      %v468 = vadd.f32 %v460, 1e-06
      %v469 = vrsqrt.pop %v461
      %v470 = vmul.f32 %v469, %v461
      %v471 = vmul.f32 %v470, %v469
      %v472 = vmul.f32 0.5, %v471
      %v473 = vsub.f32 1.5, %v472
      %v474 = vmul.f32 %v469, %v473
      %vm475 = vweird.f32 %v461
      %vm476 = vweird.f32 %v469
      %vm477 = vmor %vm475, %vm476
      %v478 = vsel %vm477, %v469, %v474
      %v479 = vrsqrt.pop %v462
      %v480 = vmul.f32 %v479, %v462
      %v481 = vmul.f32 %v480, %v479
      %v482 = vmul.f32 0.5, %v481
      %v483 = vsub.f32 1.5, %v482
      %v484 = vmul.f32 %v479, %v483
      %vm485 = vweird.f32 %v462
      %vm486 = vweird.f32 %v479
      %vm487 = vmor %vm485, %vm486
      %v488 = vsel %vm487, %v479, %v484
      %v489 = vrsqrt.pop %v463
      %v490 = vmul.f32 %v489, %v463
      %v491 = vmul.f32 %v490, %v489
      %v492 = vmul.f32 0.5, %v491
      %v493 = vsub.f32 1.5, %v492
      %v494 = vmul.f32 %v489, %v493
      %vm495 = vweird.f32 %v463
      %vm496 = vweird.f32 %v489
      %vm497 = vmor %vm495, %vm496
      %v498 = vsel %vm497, %v489, %v494
      %v499 = vrsqrt.pop %v464
      %v500 = vmul.f32 %v499, %v464
      %v501 = vmul.f32 %v500, %v499
      %v502 = vmul.f32 0.5, %v501
      %v503 = vsub.f32 1.5, %v502
      %v504 = vmul.f32 %v499, %v503
      %vm505 = vweird.f32 %v464
      %vm506 = vweird.f32 %v499
      %vm507 = vmor %vm505, %vm506
      %v508 = vsel %vm507, %v499, %v504
      %v509 = vrsqrt.pop %v465
      %v510 = vmul.f32 %v509, %v465
      %v511 = vmul.f32 %v510, %v509
      %v512 = vmul.f32 0.5, %v511
      %v513 = vsub.f32 1.5, %v512
      %v514 = vmul.f32 %v509, %v513
      %vm515 = vweird.f32 %v465
      %vm516 = vweird.f32 %v509
      %vm517 = vmor %vm515, %vm516
      %v518 = vsel %vm517, %v509, %v514
      %v519 = vrsqrt.pop %v466
      %v520 = vmul.f32 %v519, %v466
      %v521 = vmul.f32 %v520, %v519
      %v522 = vmul.f32 0.5, %v521
      %v523 = vsub.f32 1.5, %v522
      %v524 = vmul.f32 %v519, %v523
      %vm525 = vweird.f32 %v466
      %vm526 = vweird.f32 %v519
      %vm527 = vmor %vm525, %vm526
      %v528 = vsel %vm527, %v519, %v524
      %v529 = vrsqrt.pop %v467
      %v530 = vmul.f32 %v529, %v467
      %v531 = vmul.f32 %v530, %v529
      %v532 = vmul.f32 0.5, %v531
      %v533 = vsub.f32 1.5, %v532
      %v534 = vmul.f32 %v529, %v533
      %vm535 = vweird.f32 %v467
      %vm536 = vweird.f32 %v529
      %vm537 = vmor %vm535, %vm536
      %v538 = vsel %vm537, %v529, %v534
      %v539 = vrsqrt.pop %v468
      %v540 = vmul.f32 %v539, %v468
      %v541 = vmul.f32 %v540, %v539
      %v542 = vmul.f32 0.5, %v541
      %v543 = vsub.f32 1.5, %v542
      %v544 = vmul.f32 %v539, %v543
      %vm545 = vweird.f32 %v468
      %vm546 = vweird.f32 %v539
      %vm547 = vmor %vm545, %vm546
      %v548 = vsel %vm547, %v539, %v544
      %v549 = vmul.f32 %v237, %v478
      %v550 = vmul.f32 %v238, %v488
      %v551 = vmul.f32 %v239, %v498
      %v552 = vmul.f32 %v240, %v508
      %v553 = vmul.f32 %v241, %v518
      %v554 = vmul.f32 %v242, %v528
      %v555 = vmul.f32 %v243, %v538
      %v556 = vmul.f32 %v244, %v548
      %v557 = vpack.c.bf16 %v549, %v549
      %v558 = vpack.c.bf16 %v550, %v550
      %v559 = vpack.c.bf16 %v551, %v551
      %v560 = vpack.c.bf16 %v552, %v552
      %v561 = vpack.c.bf16 %v553, %v553
      %v562 = vpack.c.bf16 %v554, %v554
      %v563 = vpack.c.bf16 %v555, %v555
      %v564 = vpack.c.bf16 %v556, %v556
      %565 = vrot.lane.b32.xlu0 %v245, 112
      %v566 = vpop.permute.xlu0 %565
      %567 = vrot.lane.b32.xlu0 %v246, 112
      %v568 = vpop.permute.xlu0 %567
      %569 = vrot.lane.b32.xlu0 %v247, 112
      %v570 = vpop.permute.xlu0 %569
      %571 = vrot.lane.b32.xlu0 %v248, 112
      %v572 = vpop.permute.xlu0 %571
      %573 = vrot.lane.b32.xlu0 %v249, 112
      %v574 = vpop.permute.xlu0 %573
      %575 = vrot.lane.b32.xlu0 %v250, 112
      %v576 = vpop.permute.xlu0 %575
      %577 = vrot.lane.b32.xlu0 %v251, 112
      %v578 = vpop.permute.xlu0 %577
      %579 = vrot.lane.b32.xlu0 %v252, 112
      %v580 = vpop.permute.xlu0 %579
      %v589 = vsel %vm253, %v566, 0.0
      %590 = vadd.xlane.f32.xlu0 %v589
      %v591 = vpop.xlane.xlu0 %590
      %v592 = vsel %vm253, %v568, 0.0
      %593 = vadd.xlane.f32.xlu0 %v592
      %v594 = vpop.xlane.xlu0 %593
      %v595 = vsel %vm253, %v570, 0.0
      %596 = vadd.xlane.f32.xlu0 %v595
      %v597 = vpop.xlane.xlu0 %596
      %v598 = vsel %vm253, %v572, 0.0
      %599 = vadd.xlane.f32.xlu0 %v598
      %v600 = vpop.xlane.xlu0 %599
      %v601 = vsel %vm253, %v574, 0.0
      %602 = vadd.xlane.f32.xlu0 %v601
      %v603 = vpop.xlane.xlu0 %602
      %v604 = vsel %vm253, %v576, 0.0
      %605 = vadd.xlane.f32.xlu0 %v604
      %v606 = vpop.xlane.xlu0 %605
      %v607 = vsel %vm253, %v578, 0.0
      %608 = vadd.xlane.f32.xlu0 %v607
      %v609 = vpop.xlane.xlu0 %608
      %v610 = vsel %vm253, %v580, 0.0
      %611 = vadd.xlane.f32.xlu0 %v610
      %v612 = vpop.xlane.xlu0 %611
      %v613 = vmul.f32 %v591, %v284
      %v614 = vmul.f32 %v594, %v284
      %v615 = vmul.f32 %v597, %v284
      %v616 = vmul.f32 %v600, %v284
      %v617 = vmul.f32 %v603, %v284
      %v618 = vmul.f32 %v606, %v284
      %v619 = vmul.f32 %v609, %v284
      %v620 = vmul.f32 %v612, %v284
      %v621 = vadd.f32 %v613, 1e-06
      %v622 = vadd.f32 %v614, 1e-06
      %v623 = vadd.f32 %v615, 1e-06
      %v624 = vadd.f32 %v616, 1e-06
      %v625 = vadd.f32 %v617, 1e-06
      %v626 = vadd.f32 %v618, 1e-06
      %v627 = vadd.f32 %v619, 1e-06
      %v628 = vadd.f32 %v620, 1e-06
      %v629 = vrsqrt.pop %v621
      %v630 = vmul.f32 %v629, %v621
      %v631 = vmul.f32 %v630, %v629
      %v632 = vmul.f32 0.5, %v631
      %v633 = vsub.f32 1.5, %v632
      %v634 = vmul.f32 %v629, %v633
      %vm635 = vweird.f32 %v621
      %vm636 = vweird.f32 %v629
      %vm637 = vmor %vm635, %vm636
      %v638 = vsel %vm637, %v629, %v634
      %v639 = vrsqrt.pop %v622
      %v640 = vmul.f32 %v639, %v622
      %v641 = vmul.f32 %v640, %v639
      %v642 = vmul.f32 0.5, %v641
      %v643 = vsub.f32 1.5, %v642
      %v644 = vmul.f32 %v639, %v643
      %vm645 = vweird.f32 %v622
      %vm646 = vweird.f32 %v639
      %vm647 = vmor %vm645, %vm646
      %v648 = vsel %vm647, %v639, %v644
      %v649 = vrsqrt.pop %v623
      %v650 = vmul.f32 %v649, %v623
      %v651 = vmul.f32 %v650, %v649
      %v652 = vmul.f32 0.5, %v651
      %v653 = vsub.f32 1.5, %v652
      %v654 = vmul.f32 %v649, %v653
      %vm655 = vweird.f32 %v623
      %vm656 = vweird.f32 %v649
      %vm657 = vmor %vm655, %vm656
      %v658 = vsel %vm657, %v649, %v654
      %v659 = vrsqrt.pop %v624
      %v660 = vmul.f32 %v659, %v624
      %v661 = vmul.f32 %v660, %v659
      %v662 = vmul.f32 0.5, %v661
      %v663 = vsub.f32 1.5, %v662
      %v664 = vmul.f32 %v659, %v663
      %vm665 = vweird.f32 %v624
      %vm666 = vweird.f32 %v659
      %vm667 = vmor %vm665, %vm666
      %v668 = vsel %vm667, %v659, %v664
      %v669 = vrsqrt.pop %v625
      %v670 = vmul.f32 %v669, %v625
      %v671 = vmul.f32 %v670, %v669
      %v672 = vmul.f32 0.5, %v671
      %v673 = vsub.f32 1.5, %v672
      %v674 = vmul.f32 %v669, %v673
      %vm675 = vweird.f32 %v625
      %vm676 = vweird.f32 %v669
      %vm677 = vmor %vm675, %vm676
      %v678 = vsel %vm677, %v669, %v674
      %v679 = vrsqrt.pop %v626
      %v680 = vmul.f32 %v679, %v626
      %v681 = vmul.f32 %v680, %v679
      %v682 = vmul.f32 0.5, %v681
      %v683 = vsub.f32 1.5, %v682
      %v684 = vmul.f32 %v679, %v683
      %vm685 = vweird.f32 %v626
      %vm686 = vweird.f32 %v679
      %vm687 = vmor %vm685, %vm686
      %v688 = vsel %vm687, %v679, %v684
      %v689 = vrsqrt.pop %v627
      %v690 = vmul.f32 %v689, %v627
      %v691 = vmul.f32 %v690, %v689
      %v692 = vmul.f32 0.5, %v691
      %v693 = vsub.f32 1.5, %v692
      %v694 = vmul.f32 %v689, %v693
      %vm695 = vweird.f32 %v627
      %vm696 = vweird.f32 %v689
      %vm697 = vmor %vm695, %vm696
      %v698 = vsel %vm697, %v689, %v694
      %v699 = vrsqrt.pop %v628
      %v700 = vmul.f32 %v699, %v628
      %v701 = vmul.f32 %v700, %v699
      %v702 = vmul.f32 0.5, %v701
      %v703 = vsub.f32 1.5, %v702
      %v704 = vmul.f32 %v699, %v703
      %vm705 = vweird.f32 %v628
      %vm706 = vweird.f32 %v699
      %vm707 = vmor %vm705, %vm706
      %v708 = vsel %vm707, %v699, %v704
      %v709 = vmul.f32 %v237, %v638
      %v710 = vmul.f32 %v238, %v648
      %v711 = vmul.f32 %v239, %v658
      %v712 = vmul.f32 %v240, %v668
      %v713 = vmul.f32 %v241, %v678
      %v714 = vmul.f32 %v242, %v688
      %v715 = vmul.f32 %v243, %v698
      %v716 = vmul.f32 %v244, %v708
      %v717 = vpack.c.bf16 %v709, %v709
      %v718 = vpack.c.bf16 %v710, %v710
      %v719 = vpack.c.bf16 %v711, %v711
      %v720 = vpack.c.bf16 %v712, %v712
      %v721 = vpack.c.bf16 %v713, %v713
      %v722 = vpack.c.bf16 %v714, %v714
      %v723 = vpack.c.bf16 %v715, %v715
      %v724 = vpack.c.bf16 %v716, %v716
      %725 = vrot.lane.b32.xlu0 %v245, 104
      %v726 = vpop.permute.xlu0 %725
      %727 = vrot.lane.b32.xlu0 %v246, 104
      %v728 = vpop.permute.xlu0 %727
      %729 = vrot.lane.b32.xlu0 %v247, 104
      %v730 = vpop.permute.xlu0 %729
      %731 = vrot.lane.b32.xlu0 %v248, 104
      %v732 = vpop.permute.xlu0 %731
      %733 = vrot.lane.b32.xlu0 %v249, 104
      %v734 = vpop.permute.xlu0 %733
      %735 = vrot.lane.b32.xlu0 %v250, 104
      %v736 = vpop.permute.xlu0 %735
      %737 = vrot.lane.b32.xlu0 %v251, 104
      %v738 = vpop.permute.xlu0 %737
      %739 = vrot.lane.b32.xlu0 %v252, 104
      %v740 = vpop.permute.xlu0 %739
      %v749 = vsel %vm253, %v726, 0.0
      %750 = vadd.xlane.f32.xlu0 %v749
      %v751 = vpop.xlane.xlu0 %750
      %v752 = vsel %vm253, %v728, 0.0
      %753 = vadd.xlane.f32.xlu0 %v752
      %v754 = vpop.xlane.xlu0 %753
      %v755 = vsel %vm253, %v730, 0.0
      %756 = vadd.xlane.f32.xlu0 %v755
      %v757 = vpop.xlane.xlu0 %756
      %v758 = vsel %vm253, %v732, 0.0
      %759 = vadd.xlane.f32.xlu0 %v758
      %v760 = vpop.xlane.xlu0 %759
      %v761 = vsel %vm253, %v734, 0.0
      %762 = vadd.xlane.f32.xlu0 %v761
      %v763 = vpop.xlane.xlu0 %762
      %v764 = vsel %vm253, %v736, 0.0
      %765 = vadd.xlane.f32.xlu0 %v764
      %v766 = vpop.xlane.xlu0 %765
      %v767 = vsel %vm253, %v738, 0.0
      %768 = vadd.xlane.f32.xlu0 %v767
      %v769 = vpop.xlane.xlu0 %768
      %v770 = vsel %vm253, %v740, 0.0
      %771 = vadd.xlane.f32.xlu0 %v770
      %v772 = vpop.xlane.xlu0 %771
      %v773 = vmul.f32 %v751, %v284
      %v774 = vmul.f32 %v754, %v284
      %v775 = vmul.f32 %v757, %v284
      %v776 = vmul.f32 %v760, %v284
      %v777 = vmul.f32 %v763, %v284
      %v778 = vmul.f32 %v766, %v284
      %v779 = vmul.f32 %v769, %v284
      %v780 = vmul.f32 %v772, %v284
      %v781 = vadd.f32 %v773, 1e-06
      %v782 = vadd.f32 %v774, 1e-06
      %v783 = vadd.f32 %v775, 1e-06
      %v784 = vadd.f32 %v776, 1e-06
      %v785 = vadd.f32 %v777, 1e-06
      %v786 = vadd.f32 %v778, 1e-06
      %v787 = vadd.f32 %v779, 1e-06
      %v788 = vadd.f32 %v780, 1e-06
      %v789 = vrsqrt.pop %v781
      %v790 = vmul.f32 %v789, %v781
      %v791 = vmul.f32 %v790, %v789
      %v792 = vmul.f32 0.5, %v791
      %v793 = vsub.f32 1.5, %v792
      %v794 = vmul.f32 %v789, %v793
      %vm795 = vweird.f32 %v781
      %vm796 = vweird.f32 %v789
      %vm797 = vmor %vm795, %vm796
      %v798 = vsel %vm797, %v789, %v794
      %v799 = vrsqrt.pop %v782
      %v800 = vmul.f32 %v799, %v782
      %v801 = vmul.f32 %v800, %v799
      %v802 = vmul.f32 0.5, %v801
      %v803 = vsub.f32 1.5, %v802
      %v804 = vmul.f32 %v799, %v803
      %vm805 = vweird.f32 %v782
      %vm806 = vweird.f32 %v799
      %vm807 = vmor %vm805, %vm806
      %v808 = vsel %vm807, %v799, %v804
      %v809 = vrsqrt.pop %v783
      %v810 = vmul.f32 %v809, %v783
      %v811 = vmul.f32 %v810, %v809
      %v812 = vmul.f32 0.5, %v811
      %v813 = vsub.f32 1.5, %v812
      %v814 = vmul.f32 %v809, %v813
      %vm815 = vweird.f32 %v783
      %vm816 = vweird.f32 %v809
      %vm817 = vmor %vm815, %vm816
      %v818 = vsel %vm817, %v809, %v814
      %v819 = vrsqrt.pop %v784
      %v820 = vmul.f32 %v819, %v784
      %v821 = vmul.f32 %v820, %v819
      %v822 = vmul.f32 0.5, %v821
      %v823 = vsub.f32 1.5, %v822
      %v824 = vmul.f32 %v819, %v823
      %vm825 = vweird.f32 %v784
      %vm826 = vweird.f32 %v819
      %vm827 = vmor %vm825, %vm826
      %v828 = vsel %vm827, %v819, %v824
      %v829 = vrsqrt.pop %v785
      %v830 = vmul.f32 %v829, %v785
      %v831 = vmul.f32 %v830, %v829
      %v832 = vmul.f32 0.5, %v831
      %v833 = vsub.f32 1.5, %v832
      %v834 = vmul.f32 %v829, %v833
      %vm835 = vweird.f32 %v785
      %vm836 = vweird.f32 %v829
      %vm837 = vmor %vm835, %vm836
      %v838 = vsel %vm837, %v829, %v834
      %v839 = vrsqrt.pop %v786
      %v840 = vmul.f32 %v839, %v786
      %v841 = vmul.f32 %v840, %v839
      %v842 = vmul.f32 0.5, %v841
      %v843 = vsub.f32 1.5, %v842
      %v844 = vmul.f32 %v839, %v843
      %vm845 = vweird.f32 %v786
      %vm846 = vweird.f32 %v839
      %vm847 = vmor %vm845, %vm846
      %v848 = vsel %vm847, %v839, %v844
      %v849 = vrsqrt.pop %v787
      %v850 = vmul.f32 %v849, %v787
      %v851 = vmul.f32 %v850, %v849
      %v852 = vmul.f32 0.5, %v851
      %v853 = vsub.f32 1.5, %v852
      %v854 = vmul.f32 %v849, %v853
      %vm855 = vweird.f32 %v787
      %vm856 = vweird.f32 %v849
      %vm857 = vmor %vm855, %vm856
      %v858 = vsel %vm857, %v849, %v854
      %v859 = vrsqrt.pop %v788
      %v860 = vmul.f32 %v859, %v788
      %v861 = vmul.f32 %v860, %v859
      %v862 = vmul.f32 0.5, %v861
      %v863 = vsub.f32 1.5, %v862
      %v864 = vmul.f32 %v859, %v863
      %vm865 = vweird.f32 %v788
      %vm866 = vweird.f32 %v859
      %vm867 = vmor %vm865, %vm866
      %v868 = vsel %vm867, %v859, %v864
      %v869 = vmul.f32 %v237, %v798
      %v870 = vmul.f32 %v238, %v808
      %v871 = vmul.f32 %v239, %v818
      %v872 = vmul.f32 %v240, %v828
      %v873 = vmul.f32 %v241, %v838
      %v874 = vmul.f32 %v242, %v848
      %v875 = vmul.f32 %v243, %v858
      %v876 = vmul.f32 %v244, %v868
      %v877 = vpack.c.bf16 %v869, %v869
      %v878 = vpack.c.bf16 %v870, %v870
      %v879 = vpack.c.bf16 %v871, %v871
      %v880 = vpack.c.bf16 %v872, %v872
      %v881 = vpack.c.bf16 %v873, %v873
      %v882 = vpack.c.bf16 %v874, %v874
      %v883 = vpack.c.bf16 %v875, %v875
      %v884 = vpack.c.bf16 %v876, %v876
      %v893 = vunpack.c.l.b16 %v389
      %v894 = vunpack.c.l.b16 %v390
      %v895 = vunpack.c.l.b16 %v391
      %v896 = vunpack.c.l.b16 %v392
      %v897 = vunpack.c.l.b16 %v393
      %v898 = vunpack.c.l.b16 %v394
      %v899 = vunpack.c.l.b16 %v395
      %v900 = vunpack.c.l.b16 %v396
      %v901 = vpack.c.b16 %v894, %v893
      %v902 = vpack.c.b16 %v896, %v895
      %v903 = vpack.c.b16 %v898, %v897
      %v904 = vpack.c.b16 %v900, %v899
      %v913 = vunpack.c.l.b16 %v557
      %v914 = vunpack.c.l.b16 %v558
      %v915 = vunpack.c.l.b16 %v559
      %v916 = vunpack.c.l.b16 %v560
      %v917 = vunpack.c.l.b16 %v561
      %v918 = vunpack.c.l.b16 %v562
      %v919 = vunpack.c.l.b16 %v563
      %v920 = vunpack.c.l.b16 %v564
      %v921 = vpack.c.b16 %v914, %v913
      %v922 = vpack.c.b16 %v916, %v915
      %v923 = vpack.c.b16 %v918, %v917
      %v924 = vpack.c.b16 %v920, %v919
      %v933 = vunpack.c.l.b16 %v717
      %v934 = vunpack.c.l.b16 %v718
      %v935 = vunpack.c.l.b16 %v719
      %v936 = vunpack.c.l.b16 %v720
      %v937 = vunpack.c.l.b16 %v721
      %v938 = vunpack.c.l.b16 %v722
      %v939 = vunpack.c.l.b16 %v723
      %v940 = vunpack.c.l.b16 %v724
      %v941 = vpack.c.b16 %v934, %v933
      %v942 = vpack.c.b16 %v936, %v935
      %v943 = vpack.c.b16 %v938, %v937
      %v944 = vpack.c.b16 %v940, %v939
      %v953 = vunpack.c.l.b16 %v877
      %v954 = vunpack.c.l.b16 %v878
      %v955 = vunpack.c.l.b16 %v879
      %v956 = vunpack.c.l.b16 %v880
      %v957 = vunpack.c.l.b16 %v881
      %v958 = vunpack.c.l.b16 %v882
      %v959 = vunpack.c.l.b16 %v883
      %v960 = vunpack.c.l.b16 %v884
      %v961 = vpack.c.b16 %v954, %v953
      %v962 = vpack.c.b16 %v956, %v955
      %v963 = vpack.c.b16 %v958, %v957
      %v964 = vpack.c.b16 %v960, %v959
      %v967 = vsel %vm253, %v901, %v921
      %v970 = vsel %vm253, %v902, %v922
      %v973 = vsel %vm253, %v903, %v923
      %v976 = vsel %vm253, %v904, %v924
      %vm977 = vcmask 130048
      %v979 = vsel %vm977, %v967, %v941
      %v981 = vsel %vm977, %v970, %v942
      %v983 = vsel %vm977, %v973, %v943
      %v985 = vsel %vm977, %v976, %v944
      %vm986 = vcmask 195584
      %v988 = vsel %vm986, %v979, %v961
      %v990 = vsel %vm986, %v981, %v962
      %v992 = vsel %vm986, %v983, %v963
      %v994 = vsel %vm986, %v985, %v964
      %v995 = vld [vmem:[%s1] sm:$0xf]
      %v996 = vld [vmem:[%s1 + $0x4] sm:$0xf]
      %v997 = vld [vmem:[%s1 + $0x8] sm:$0xf]
      %v998 = vld [vmem:[%s1 + $0xc] sm:$0xf]
      %v999 = vld [vmem:[%s2] sm:$0x1]
      %v1001 = vperm.slane %v999, 0
      %v1007 = vunpack.c.l.b16 %v995
      %v1008 = vunpack.c.l.b16 %v996
      %v1009 = vunpack.c.l.b16 %v997
      %v1010 = vunpack.c.l.b16 %v998
      %v1011 = vpack.c.b16 %v1008, %v1007
      %v1012 = vpack.c.b16 %v1010, %v1009
      %vm1015 = vcmask 261120
      %v1016 = vsel %vm1015, %v988, 0
      %v1018 = vsel %vm1015, %v990, 0
      %v1020 = vsel %vm1015, %v992, 0
      %v1022 = vsel %vm1015, %v994, 0
      %1024 = vmatpush.bf16.msra.mxu0 0
      %1025 = vmatpush.bf16.msra.mxu0 0
      %1026 = vmatpush.bf16.msra.mxu0 0
      %1027 = vmatpush.bf16.msra.mxu0 0
      %1028 = vmatpush.bf16.msra.mxu0 0
      %1029 = vmatpush.bf16.msra.mxu0 0
      %1030 = vmatpush.bf16.msra.mxu0 %v1012
      %1031 = vmatpush.bf16.msra.mxu0 %v1011
      %1032 = vmatmul.bf16.gmra.mxu0 %v1016
      %v1033 = vpop.f32.mrf.mxu0
      %v1034 = vadd.f32 %v1001, %v1033
      %v1035 = vpop.f32.mrf.mxu0
      %v1036 = vadd.f32 %v1001, %v1035
      %1037 = vmatmul.bf16.gmra.mxu0 %v1018
      %v1038 = vpop.f32.mrf.mxu0
      %v1039 = vadd.f32 %v1001, %v1038
      %v1040 = vpop.f32.mrf.mxu0
      %v1041 = vadd.f32 %v1001, %v1040
      %1042 = vmatmul.bf16.gmra.mxu0 %v1020
      %v1043 = vpop.f32.mrf.mxu0
      %v1044 = vadd.f32 %v1001, %v1043
      %v1045 = vpop.f32.mrf.mxu0
      %v1046 = vadd.f32 %v1001, %v1045
      %1047 = vmatmul.bf16.gmra.mxu0 %v1022
      %v1048 = vpop.f32.mrf.mxu0
      %v1049 = vadd.f32 %v1001, %v1048
      %v1050 = vpop.f32.mrf.mxu0
      %v1051 = vadd.f32 %v1001, %v1050
      %1052 = vdwg.mxu0
      %v1053 = vmul.f32 %v1034, %v1034
      %v1054 = vmul.f32 %v1036, %v1036
      %v1055 = vmul.f32 %v1039, %v1039
      %v1056 = vmul.f32 %v1041, %v1041
      %v1057 = vmul.f32 %v1044, %v1044
      %v1058 = vmul.f32 %v1046, %v1046
      %v1059 = vmul.f32 %v1049, %v1049
      %v1060 = vmul.f32 %v1051, %v1051
      %v1061 = vsel %vm253, %v1053, 0.0
      %1062 = vadd.xlane.f32.xlu0 %v1061
      %v1063 = vpop.xlane.xlu0 %1062
      %v1064 = vsel %vm253, %v1054, 0.0
      %1065 = vadd.xlane.f32.xlu0 %v1064
      %v1066 = vpop.xlane.xlu0 %1065
      %v1067 = vsel %vm253, %v1055, 0.0
      %1068 = vadd.xlane.f32.xlu0 %v1067
      %v1069 = vpop.xlane.xlu0 %1068
      %v1070 = vsel %vm253, %v1056, 0.0
      %1071 = vadd.xlane.f32.xlu0 %v1070
      %v1072 = vpop.xlane.xlu0 %1071
      %v1073 = vsel %vm253, %v1057, 0.0
      %1074 = vadd.xlane.f32.xlu0 %v1073
      %v1075 = vpop.xlane.xlu0 %1074
      %v1076 = vsel %vm253, %v1058, 0.0
      %1077 = vadd.xlane.f32.xlu0 %v1076
      %v1078 = vpop.xlane.xlu0 %1077
      %v1079 = vsel %vm253, %v1059, 0.0
      %1080 = vadd.xlane.f32.xlu0 %v1079
      %v1081 = vpop.xlane.xlu0 %1080
      %v1082 = vsel %vm253, %v1060, 0.0
      %1083 = vadd.xlane.f32.xlu0 %v1082
      %v1084 = vpop.xlane.xlu0 %1083
      %v1085 = vmul.f32 %v1063, %v284
      %v1086 = vmul.f32 %v1066, %v284
      %v1087 = vmul.f32 %v1069, %v284
      %v1088 = vmul.f32 %v1072, %v284
      %v1089 = vmul.f32 %v1075, %v284
      %v1090 = vmul.f32 %v1078, %v284
      %v1091 = vmul.f32 %v1081, %v284
      %v1092 = vmul.f32 %v1084, %v284
      %v1093 = vadd.f32 %v1085, 1e-06
      %v1094 = vadd.f32 %v1086, 1e-06
      %v1095 = vadd.f32 %v1087, 1e-06
      %v1096 = vadd.f32 %v1088, 1e-06
      %v1097 = vadd.f32 %v1089, 1e-06
      %v1098 = vadd.f32 %v1090, 1e-06
      %v1099 = vadd.f32 %v1091, 1e-06
      %v1100 = vadd.f32 %v1092, 1e-06
      %v1101 = vrsqrt.pop %v1093
      %v1102 = vmul.f32 %v1101, %v1093
      %v1103 = vmul.f32 %v1102, %v1101
      %v1104 = vmul.f32 0.5, %v1103
      %v1105 = vsub.f32 1.5, %v1104
      %v1106 = vmul.f32 %v1101, %v1105
      %vm1107 = vweird.f32 %v1093
      %vm1108 = vweird.f32 %v1101
      %vm1109 = vmor %vm1107, %vm1108
      %v1110 = vsel %vm1109, %v1101, %v1106
      %v1111 = vrsqrt.pop %v1094
      %v1112 = vmul.f32 %v1111, %v1094
      %v1113 = vmul.f32 %v1112, %v1111
      %v1114 = vmul.f32 0.5, %v1113
      %v1115 = vsub.f32 1.5, %v1114
      %v1116 = vmul.f32 %v1111, %v1115
      %vm1117 = vweird.f32 %v1094
      %vm1118 = vweird.f32 %v1111
      %vm1119 = vmor %vm1117, %vm1118
      %v1120 = vsel %vm1119, %v1111, %v1116
      %v1121 = vrsqrt.pop %v1095
      %v1122 = vmul.f32 %v1121, %v1095
      %v1123 = vmul.f32 %v1122, %v1121
      %v1124 = vmul.f32 0.5, %v1123
      %v1125 = vsub.f32 1.5, %v1124
      %v1126 = vmul.f32 %v1121, %v1125
      %vm1127 = vweird.f32 %v1095
      %vm1128 = vweird.f32 %v1121
      %vm1129 = vmor %vm1127, %vm1128
      %v1130 = vsel %vm1129, %v1121, %v1126
      %v1131 = vrsqrt.pop %v1096
      %v1132 = vmul.f32 %v1131, %v1096
      %v1133 = vmul.f32 %v1132, %v1131
      %v1134 = vmul.f32 0.5, %v1133
      %v1135 = vsub.f32 1.5, %v1134
      %v1136 = vmul.f32 %v1131, %v1135
      %vm1137 = vweird.f32 %v1096
      %vm1138 = vweird.f32 %v1131
      %vm1139 = vmor %vm1137, %vm1138
      %v1140 = vsel %vm1139, %v1131, %v1136
      %v1141 = vrsqrt.pop %v1097
      %v1142 = vmul.f32 %v1141, %v1097
      %v1143 = vmul.f32 %v1142, %v1141
      %v1144 = vmul.f32 0.5, %v1143
      %v1145 = vsub.f32 1.5, %v1144
      %v1146 = vmul.f32 %v1141, %v1145
      %vm1147 = vweird.f32 %v1097
      %vm1148 = vweird.f32 %v1141
      %vm1149 = vmor %vm1147, %vm1148
      %v1150 = vsel %vm1149, %v1141, %v1146
      %v1151 = vrsqrt.pop %v1098
      %v1152 = vmul.f32 %v1151, %v1098
      %v1153 = vmul.f32 %v1152, %v1151
      %v1154 = vmul.f32 0.5, %v1153
      %v1155 = vsub.f32 1.5, %v1154
      %v1156 = vmul.f32 %v1151, %v1155
      %vm1157 = vweird.f32 %v1098
      %vm1158 = vweird.f32 %v1151
      %vm1159 = vmor %vm1157, %vm1158
      %v1160 = vsel %vm1159, %v1151, %v1156
      %v1161 = vrsqrt.pop %v1099
      %v1162 = vmul.f32 %v1161, %v1099
      %v1163 = vmul.f32 %v1162, %v1161
      %v1164 = vmul.f32 0.5, %v1163
      %v1165 = vsub.f32 1.5, %v1164
      %v1166 = vmul.f32 %v1161, %v1165
      %vm1167 = vweird.f32 %v1099
      %vm1168 = vweird.f32 %v1161
      %vm1169 = vmor %vm1167, %vm1168
      %v1170 = vsel %vm1169, %v1161, %v1166
      %v1171 = vrsqrt.pop %v1100
      %v1172 = vmul.f32 %v1171, %v1100
      %v1173 = vmul.f32 %v1172, %v1171
      %v1174 = vmul.f32 0.5, %v1173
      %v1175 = vsub.f32 1.5, %v1174
      %v1176 = vmul.f32 %v1171, %v1175
      %vm1177 = vweird.f32 %v1100
      %vm1178 = vweird.f32 %v1171
      %vm1179 = vmor %vm1177, %vm1178
      %v1180 = vsel %vm1179, %v1171, %v1176
      %v1181 = vmul.f32 %v1034, %v1110
      %v1182 = vmul.f32 %v1036, %v1120
      %v1183 = vmul.f32 %v1039, %v1130
      %v1184 = vmul.f32 %v1041, %v1140
      %v1185 = vmul.f32 %v1044, %v1150
      %v1186 = vmul.f32 %v1046, %v1160
      %v1187 = vmul.f32 %v1049, %v1170
      %v1188 = vmul.f32 %v1051, %v1180
      %v1189 = vpack.c.bf16 %v1182, %v1181
      %v1190 = vpack.c.bf16 %v1184, %v1183
      %v1191 = vpack.c.bf16 %v1186, %v1185
      %v1192 = vpack.c.bf16 %v1188, %v1187
      %v1193 = vld [vmem:[%s3] sm:$0xf]
      %v1194 = vld [vmem:[%s4] sm:$0x1]
      %v1196 = vperm.slane %v1194, 0
      %v1199 = vsel %vm253, %v1189, 0
      %v1202 = vsel %vm253, %v1190, 0
      %v1205 = vsel %vm253, %v1191, 0
      %v1208 = vsel %vm253, %v1192, 0
      %vm1210 = vcmask 1043456
      %v1212 = vsel %vm1210, %v1193, 0
      %1214 = vmatpush.bf16.msra.mxu0 0
      %1215 = vmatpush.bf16.msra.mxu0 0
      %1216 = vmatpush.bf16.msra.mxu0 0
      %1217 = vmatpush.bf16.msra.mxu0 0
      %1218 = vmatpush.bf16.msra.mxu0 0
      %1219 = vmatpush.bf16.msra.mxu0 0
      %1220 = vmatpush.bf16.msra.mxu0 0
      %1221 = vmatpush.bf16.msra.mxu0 %v1212
      %1222 = vmatmul.bf16.gmra.mxu0 %v1199
      %v1223 = vpop.f32.mrf.mxu0
      %v1224 = vadd.f32 %v1196, %v1223
      %v1225 = vpop.f32.mrf.mxu0
      %v1226 = vadd.f32 %v1196, %v1225
      %1227 = vmatmul.bf16.gmra.mxu0 %v1202
      %v1228 = vpop.f32.mrf.mxu0
      %v1229 = vadd.f32 %v1196, %v1228
      %v1230 = vpop.f32.mrf.mxu0
      %v1231 = vadd.f32 %v1196, %v1230
      %1232 = vmatmul.bf16.gmra.mxu0 %v1205
      %v1233 = vpop.f32.mrf.mxu0
      %v1234 = vadd.f32 %v1196, %v1233
      %v1235 = vpop.f32.mrf.mxu0
      %v1236 = vadd.f32 %v1196, %v1235
      %1237 = vmatmul.bf16.gmra.mxu0 %v1208
      %v1238 = vpop.f32.mrf.mxu0
      %v1239 = vadd.f32 %v1196, %v1238
      %v1240 = vpop.f32.mrf.mxu0
      %v1241 = vadd.f32 %v1196, %v1240
      %1242 = vdwg.mxu0
      %v1243 = vpack.c.bf16 %v1224, %v1224
      %v1244 = vpack.c.bf16 %v1226, %v1226
      %v1245 = vpack.c.bf16 %v1229, %v1229
      %v1246 = vpack.c.bf16 %v1231, %v1231
      %v1247 = vpack.c.bf16 %v1234, %v1234
      %v1248 = vpack.c.bf16 %v1236, %v1236
      %v1249 = vpack.c.bf16 %v1239, %v1239
      %v1250 = vpack.c.bf16 %v1241, %v1241
      %vm1251 = vcmask 257024
      %1252 = vst.msk [vmem:[%s226] sm:$0xf] %vm1251, %v1243
      %1253 = vst.msk [vmem:[%s226 + $0x4] sm:$0xf] %vm1251, %v1244
      %1254 = vst.msk [vmem:[%s226 + $0x8] sm:$0xf] %vm1251, %v1245
      %1255 = vst.msk [vmem:[%s226 + $0xc] sm:$0xf] %vm1251, %v1246
      %1256 = vst.msk [vmem:[%s226 + $0x10] sm:$0xf] %vm1251, %v1247
      %1257 = vst.msk [vmem:[%s226 + $0x14] sm:$0xf] %vm1251, %v1248
      %1258 = vst.msk [vmem:[%s226 + $0x18] sm:$0xf] %vm1251, %v1249
      %1259 = vst.msk [vmem:[%s226 + $0x1c] sm:$0xf] %vm1251, %v1250
      %s1260 = smul.u32 8, %s16
      %p1261 = scmp.lt.s32.totalorder %s1260, 15
      %s1262 = scalar_select %p1261, %s1260, 15
      %s1263 = smul.addr %s1262, 4
      %s1264 = scalar_lea.vmem %s5, %s1263
      // Predicated region
      $region41: #{tpu_custom_call.1} parent=39 // pred_check
        %p1265 = pneg %p144
      $region42: #{tpu_custom_call.1} parent=39 // pred_check_branch
        %1267 = sbr.rel (%p1265) target = $region44
      $region43: #{tpu_custom_call.1} parent=39 // pred_region
        %s1268 = smul.u32 8, %s16
      $region44: #{tpu_custom_call.1} parent=39 // pred_fallthru
        _
    $region40: #{tpu_custom_call.1} parent=5 // pred_fallthru
      _
    %p1269 = scmp.le.s32.totalorder 2, %s11
    // Predicated region
    $region45: #{tpu_custom_call.1} parent=5 // pred_check
      %p1270 = pneg %p1269
    $region46: #{tpu_custom_call.1} parent=5 // pred_check_branch
      %1272 = sbr.rel (%p1270) target = $region48
    $region47: #{tpu_custom_call.1} parent=5 // pred_region
      %s1273 = ssub.s32 %s11, 2
      // Predicated region
      $region49: #{tpu_custom_call.1} parent=47 // pred_check
        %p1274 = pneg %p150
      $region50: #{tpu_custom_call.1} parent=47 // pred_check_branch
        %1276 = sbr.rel (%p1274) target = $region52
      $region51: #{tpu_custom_call.1} parent=47 // pred_region
        %s1277 = smul.u32 8, %s17
        %p1278 = scmp.lt.s32.totalorder %s1277, 15
        %s1279 = scalar_select %p1278, %s1277, 15
        %s1280 = smul.addr %s1279, 4
        %s1281 = scalar_lea.vmem %s5, %s1280
      $region52: #{tpu_custom_call.1} parent=47 // pred_fallthru
        _
    $region48: #{tpu_custom_call.1} parent=5 // pred_fallthru
      _
  $region6: #{tpu_custom_call.1} parent=0 // loop_footer
    %s15 = sadd.s32 1, %s11
  $region7: #{tpu_custom_call.1} parent=0 // loop_footer_branch
    %10 = sbr.rel target = $region3
  $region8: #{tpu_custom_call.1} parent=0 // loop_exit
    _

</llo_original>
